<compile_context>
chip_gen: v5e
topology: v5e:2x2
jax: 0.10.0
libtpu: 0.0.40
codegen_flags: <defaults>
</compile_context>

<pallas_src>
import math
import functools

import jax
import jax.numpy as jnp
from jax.experimental import pallas as pl
from jax.experimental.pallas import tpu as pltpu


LANE = 128
SUBLANE = 8


def token_embed_kernel(x_ref, w_ref, o_ref):
    # x_ref: (TB, L, c_in)    -- TB batch rows of the [B, L, c_in] input
    # w_ref: (3*c_in, TN)     -- flattened conv taps: row k*c_in + c == conv_weight[:, c, k]
    # o_ref: (TB, L, TN)      -- bf16 (or out_dtype) output tile
    tb, L, c_in = x_ref.shape
    w = w_ref[...]

    if L % SUBLANE == 0:
        # Fused path: circular taps of all TB rows concatenated on the channel axis and
        # contracted with the weight slab in ONE MXU matmul.  The (TB, L) <-> (TB*L)
        # merge/split reshapes are layout-free because L % 8 == 0.
        x = x_ref[...]
        x_m1 = jnp.roll(x, 1, axis=1)    # x[:, (t-1) mod L, :]  <-> conv tap k=0
        x_p1 = jnp.roll(x, -1, axis=1)   # x[:, (t+1) mod L, :]  <-> conv tap k=2
        x_stack = jnp.concatenate([x_m1, x, x_p1], axis=-1)          # (TB, L, 3*c_in)
        acc = jnp.dot(x_stack.reshape(tb * L, 3 * c_in), w,
                      preferred_element_type=jnp.float32)
        o_ref[...] = acc.reshape(tb, L, -1).astype(o_ref.dtype)
    else:
        # Ragged-L path: avoid the sublane relayout copies the merge reshape would
        # trigger; do one 2-D matmul per batch row instead (still HBM-bound, MXU has
        # plenty of slack).
        def body(b, carry):
            xb = x_ref[b]                                            # (L, c_in)
            xs = jnp.concatenate(
                [jnp.roll(xb, 1, axis=0), xb, jnp.roll(xb, -1, axis=0)], axis=-1)
            o_ref[b] = jnp.dot(xs, w,
                               preferred_element_type=jnp.float32).astype(o_ref.dtype)
            return carry

        jax.lax.fori_loop(0, tb, body, 0)


def _round_up(x, m):
    return ((x + m - 1) // m) * m


def _hw_info():
    """(vmem_capacity_bytes, has_two_tensorcores) with conservative fallbacks."""
    two_tc = False
    vmem_cap = None
    try:
        vmem_cap = int(pltpu.get_tpu_info().vmem_capacity_bytes)
    except Exception:
        vmem_cap = None
    try:
        kind = jax.devices()[0].device_kind.lower()
    except Exception:
        kind = ""
    if "v7" in kind:
        two_tc = True
    if vmem_cap is None:
        vmem_cap = (64 << 20) if two_tc else (128 << 20)
    # dual-TC generations also expose the smaller (64 MiB) per-core VMEM
    two_tc = two_tc or vmem_cap <= (64 << 20)
    return vmem_cap, two_tc


def _plan_tiles(B, L, c_in, d_model, in_itemsize, out_itemsize):
    """Choose (tb, tn, vmem_limit): batch rows / output columns per grid step."""
    vmem_cap, two_tc = _hw_info()
    budget = (vmem_cap * 5) // 8          # ~40 MiB on v7x, ~80 MiB on v5e/v6e
    vmem_limit = (vmem_cap * 3) // 4      # ~48 MiB on v7x, ~96 MiB on v5e/v6e

    l_pad = _round_up(L, SUBLANE)
    cin_lanes = _round_up(c_in, LANE)
    k_lanes = _round_up(3 * c_in, LANE)
    min_steps = 4 if two_tc else 2

    def per_row_bytes(tn):
        tn_lanes = _round_up(tn, LANE)
        b = 2 * l_pad * cin_lanes * in_itemsize        # x block (double-buffered, lane-padded)
        b += l_pad * k_lanes * in_itemsize             # 3-tap concat temporary
        b += l_pad * tn_lanes * 4                      # f32 accumulator
        b += 2 * l_pad * tn_lanes * out_itemsize       # out block (double-buffered)
        return b

    def weight_bytes(tn):
        return 2 * _round_up(3 * c_in, SUBLANE) * _round_up(tn, LANE) * in_itemsize

    def pick_tb(tn):
        avail = budget - weight_bytes(tn)
        tb = max(1, avail // max(per_row_bytes(tn), 1))
        out_row = l_pad * _round_up(tn, LANE) * out_itemsize
        tb = min(tb, max(1, (8 << 20) // max(out_row, 1)))   # ~<=8 MiB of output per step
        return int(max(1, min(tb, B)))

    # N tiling: only worthwhile when d_model is 128-aligned; otherwise emit the ragged
    # width in one masked-store tile (no pad + post-call slice copy).
    tn = d_model
    tb = pick_tb(tn)
    if d_model % LANE == 0 and d_model > LANE and pl.cdiv(B, tb) < min_steps:
        for cand in (512, 384, 256, 128):
            if cand >= d_model or d_model % cand:
                continue
            cand_tb = pick_tb(cand)
            if pl.cdiv(B, cand_tb) * (d_model // cand) >= min_steps or cand == 128:
                tn, tb = cand, cand_tb
                break

    # Only on dual-TC parts: make sure both TensorCores get at least one step.
    if two_tc and B > 1 and pl.cdiv(B, tb) * (d_model // tn) < 2:
        tb = int(pl.cdiv(B, 2))

    return tb, tn, int(vmem_limit)


@functools.partial(jax.jit, static_argnames=("out_dtype",))
def data_embedding_wo_pos_temp(x, x_mark, conv_weight, *, out_dtype=jnp.bfloat16):
    """x: [B, L, c_in]; x_mark ignored; conv_weight: [d_model, c_in, 3] -> [B, L, d_model]."""
    del x_mark  # unused by this module's forward
    B, L, c_in = x.shape
    d_model = conv_weight.shape[0]

    # w_flat[k*c_in + c, d] = conv_weight[d, c, k]  -> single 2-D weight slab (loaded once)
    w_flat = jnp.transpose(conv_weight, (2, 1, 0)).reshape(3 * c_in, d_model)

    tb, tn, vmem_limit = _plan_tiles(
        B, L, c_in, d_model,
        jnp.dtype(x.dtype).itemsize, jnp.dtype(out_dtype).itemsize)
    nb = int(pl.cdiv(B, tb))          # partial last batch block handled by Pallas
    nn = d_model // tn                # tn always divides d_model by construction

    out = pl.pallas_call(
        token_embed_kernel,
        out_shape=jax.ShapeDtypeStruct((B, L, d_model), out_dtype),
        grid_spec=pltpu.PrefetchScalarGridSpec(
            num_scalar_prefetch=0,
            grid=(nb, nn),
            in_specs=[
                pl.BlockSpec((tb, L, c_in), lambda i, j: (i, 0, 0)),
                pl.BlockSpec((3 * c_in, tn), lambda i, j: (0, j)),
            ],
            out_specs=pl.BlockSpec((tb, L, tn), lambda i, j: (i, 0, j)),
        ),
        compiler_params=pltpu.CompilerParams(
            dimension_semantics=("parallel", "parallel"),
            vmem_limit_bytes=vmem_limit,
        ),
    )(x, w_flat)
    return out


def reference_token_embedding(x, conv_weight):
    """Pure-JAX reference of the PyTorch TokenEmbedding forward (circular conv1d, k=3, no bias)."""
    x_ncl = jnp.transpose(x, (0, 2, 1))                             # [B, c_in, L]
    x_pad = jnp.pad(x_ncl, ((0, 0), (0, 0), (1, 1)), mode="wrap")   # circular padding=1
    B, C, Lp = x_pad.shape
    L = Lp - 2
    taps = jnp.stack([x_pad[:, :, k:k + L] for k in range(3)], axis=-1)  # [B, c_in, L, 3]
    out_ndl = jnp.einsum("dck,bclk->bdl", conv_weight, taps)
    return jnp.transpose(out_ndl, (0, 2, 1))                        # [B, L, d_model]


def _make_conv_weight(key, d_model, c_in):
    # Deterministic Kaiming-normal init (fan_in, leaky_relu) for Conv1d weight [d_model, c_in, 3]
    fan_in = c_in * 3
    gain = math.sqrt(2.0 / (1.0 + 0.01 ** 2))
    std = gain / math.sqrt(fan_in)
    return std * jax.random.normal(key, (d_model, c_in, 3), dtype=jnp.float32)


if __name__ == "__main__":
    key = jax.random.PRNGKey(0)

    # --- check 1: small, unaligned d_model (ragged masked-store path, single N tile) ---
    B, L, c_in, d_model = 2, 8, 4, 32
    k_x, k_mark, k_w, k2 = jax.random.split(key, 4)
    x = jax.random.normal(k_x, (B, L, c_in), dtype=jnp.float32)
    x_mark = jax.random.normal(k_mark, (B, L, 4), dtype=jnp.float32)  # unused by forward
    conv_weight = _make_conv_weight(k_w, d_model, c_in)

    out = data_embedding_wo_pos_temp(x, x_mark, conv_weight)
    out = jax.block_until_ready(out)
    ref = reference_token_embedding(x, conv_weight)
    assert out.shape == (B, L, d_model), out.shape
    assert out.dtype == jnp.bfloat16, out.dtype
    assert jnp.allclose(out.astype(jnp.float32), ref, atol=2e-2, rtol=2e-2), \
        float(jnp.abs(out.astype(jnp.float32) - ref).max())

    # --- check 2: 128-aligned d_model (lane-dense stores, N-split grid axis) ---
    B2, L2, c2, d2 = 4, 8, 7, 256
    k_x2, k_w2 = jax.random.split(k2)
    x2 = jax.random.normal(k_x2, (B2, L2, c2), dtype=jnp.float32)
    x_mark2 = jnp.zeros((B2, L2, 4), dtype=jnp.float32)
    conv_weight2 = _make_conv_weight(k_w2, d2, c2)

    out2 = data_embedding_wo_pos_temp(x2, x_mark2, conv_weight2)
    out2 = jax.block_until_ready(out2)
    ref2 = reference_token_embedding(x2, conv_weight2)
    assert out2.shape == (B2, L2, d2), out2.shape
    assert jnp.allclose(out2.astype(jnp.float32), ref2, atol=2e-2, rtol=2e-2), \
        float(jnp.abs(out2.astype(jnp.float32) - ref2).max())

    print("KERNEL_OK")
</pallas_src>

<mosaic_0001>
module attributes {stable_mosaic.version = 11 : i64} {
  func.func @token_embed_kernel(%arg0: i32, %arg1: i32, %arg2: memref<2x8x4xf32, #tpu.memory_space<vmem>>, %arg3: memref<12x32xf32, #tpu.memory_space<vmem>>, %arg4: memref<2x8x32xbf16, #tpu.memory_space<vmem>>) attributes {dimension_semantics = [#tpu.dimension_semantics<parallel>, #tpu.dimension_semantics<parallel>], iteration_bounds = array<i64: 1, 1>, scalar_prefetch = 0 : i64, scratch_operands = 0 : i64, tpu.core_type = #tpu.core_type<tc>, window_params = [{transform_indices = @transform_0, window_bounds = array<i64: 2, 8, 4>}, {transform_indices = @transform_1, window_bounds = array<i64: 12, 32>}, {transform_indices = @transform_2, window_bounds = array<i64: 2, 8, 32>}]} {
    %c0 = arith.constant 0 : index
    %c0_0 = arith.constant 0 : index
    %0 = vector.load %arg3[%c0, %c0_0] : memref<12x32xf32, #tpu.memory_space<vmem>>, vector<12x32xf32>
    %c0_1 = arith.constant 0 : index
    %c0_2 = arith.constant 0 : index
    %c0_3 = arith.constant 0 : index
    %1 = vector.load %arg2[%c0_1, %c0_2, %c0_3] : memref<2x8x4xf32, #tpu.memory_space<vmem>>, vector<2x8x4xf32>
    %2 = vector.extract_strided_slice %1 {offsets = [0, 7, 0], sizes = [2, 1, 4], strides = [1, 1, 1]} : vector<2x8x4xf32> to vector<2x1x4xf32>
    %3 = vector.extract_strided_slice %1 {offsets = [0, 0, 0], sizes = [2, 7, 4], strides = [1, 1, 1]} : vector<2x8x4xf32> to vector<2x7x4xf32>
    %4 = tpu.concatenate %2, %3 in 1 : vector<2x1x4xf32>, vector<2x7x4xf32> -> vector<2x8x4xf32>
    %5 = vector.extract_strided_slice %1 {offsets = [0, 1, 0], sizes = [2, 7, 4], strides = [1, 1, 1]} : vector<2x8x4xf32> to vector<2x7x4xf32>
    %6 = vector.extract_strided_slice %1 {offsets = [0, 0, 0], sizes = [2, 1, 4], strides = [1, 1, 1]} : vector<2x8x4xf32> to vector<2x1x4xf32>
    %7 = tpu.concatenate %5, %6 in 1 : vector<2x7x4xf32>, vector<2x1x4xf32> -> vector<2x8x4xf32>
    %8 = tpu.concatenate %4, %1, %7 in 2 : vector<2x8x4xf32>, vector<2x8x4xf32>, vector<2x8x4xf32> -> vector<2x8x12xf32>
    %9 = vector.shape_cast %8 : vector<2x8x12xf32> to vector<16x12xf32>
    %cst = arith.constant dense<0.000000e+00> : vector<16x32xf32>
    %10 = tpu.matmul %9, %0, %cst {dimension_numbers = #tpu.dot_dimension_numbers<[1], [0], [0], [1], [0, 0, 1, 1], [], []>} : vector<16x12xf32>, vector<12x32xf32>, vector<16x32xf32> -> vector<16x32xf32>
    %11 = vector.shape_cast %10 : vector<16x32xf32> to vector<2x8x32xf32>
    %12 = arith.truncf %11 : vector<2x8x32xf32> to vector<2x8x32xbf16>
    %c0_4 = arith.constant 0 : index
    %c0_5 = arith.constant 0 : index
    %c0_6 = arith.constant 0 : index
    %13 = vector.load %arg4[%c0_4, %c0_5, %c0_6] : memref<2x8x32xbf16, #tpu.memory_space<vmem>>, vector<2x8x32xbf16>
    tpu.vector_store %arg4[%c0_4, %c0_5, %c0_6], %12 {strides = array<i32>} : memref<2x8x32xbf16, #tpu.memory_space<vmem>>, vector<2x8x32xbf16>,
    return
  }
  func.func @transform_0(%arg0: i32, %arg1: i32) -> (i32, i32, i32) {
    %c0_i32 = arith.constant 0 : i32
    %c0_i32_0 = arith.constant 0 : i32
    %c0_i32_1 = arith.constant 0 : i32
    return %arg0, %c0_i32, %c0_i32_0 : i32, i32, i32
  }
  func.func @transform_1(%arg0: i32, %arg1: i32) -> (i32, i32) {
    %c0_i32 = arith.constant 0 : i32
    %c0_i32_0 = arith.constant 0 : i32
    return %c0_i32, %arg1 : i32, i32
  }
  func.func @transform_2(%arg0: i32, %arg1: i32) -> (i32, i32, i32) {
    %c0_i32 = arith.constant 0 : i32
    %c0_i32_0 = arith.constant 0 : i32
    return %arg0, %c0_i32, %arg1 : i32, i32, i32
  }
}

</mosaic_0001>

<llo_original>
// kernel: data_embedding_wo_pos_temp.1
$region0: #{data_embedding_wo_pos_temp.1}
  #allocation0 [shape = 'u32[]', space=smem, size = 0x4, offset = 0x4, fixed_abs, tag = 'smem constant byte address 0x4 - core index']
  #allocation1 [shape = 'u32[72,128]{1,0:T(1,128)}', space=vmem, size = 0x9000, scoped, tag = 'internal scratch']
  %s0 = inlined_call_operand.vmem [shape: f32[2,8,4], index: 0, kind: input, shape index: {}]
  %s1 = inlined_call_operand.vmem [shape: f32[12,32], index: 1, kind: input, shape index: {}]
  %s2 = inlined_call_operand.hbm [shape: bf16[2,8,32], index: 2, kind: output, shape index: {}]
  %s3 = sld [smem:[#allocation0]]
  $region18: #{data_embedding_wo_pos_temp.1} parent=0
    _
  %s5 = ssub.s32 1, %s3
  %s6 = scalar_select 0, %s5, %s3
  $region1: #{data_embedding_wo_pos_temp.1} parent=0
    #allocation2 [shape = 'u8[4096]{0}', space=vmem, size = 0x1000, scoped, tag = 'output window, operand 0, single buffered']
    #allocation3 [shape = 's32[1]{0}', space=sflag, size = 0x4, scoped, tag = 'scoped memory for data_embedding_wo_pos_temp.1']
    %7 = vsyncpa [#allocation3], 0
    // Predicated region
    $region2: #{data_embedding_wo_pos_temp.1} parent=1 // pred_check
      _
    $region3: #{data_embedding_wo_pos_temp.1} parent=1 // pred_check_branch
      %9 = sbr.rel (0) target = $region5
    $region4: #{data_embedding_wo_pos_temp.1} parent=1 // pred_region
      _
    $region5: #{data_embedding_wo_pos_temp.1} parent=1 // pred_fallthru
      _
    // Predicated region
    $region6: #{data_embedding_wo_pos_temp.1} parent=1 // pred_check
      _
    $region7: #{data_embedding_wo_pos_temp.1} parent=1 // pred_check_branch
      %11 = sbr.rel (0) target = $region9
    $region8: #{data_embedding_wo_pos_temp.1} parent=1 // pred_region
      _
    $region9: #{data_embedding_wo_pos_temp.1} parent=1 // pred_fallthru
      _
    %v12 = vld [vmem:[%s1] sm:$0xff]
    %v13 = vld [vmem:[%s1 + $0x8] sm:$0xf]
    %v14 = vld [vmem:[%s0] sm:$0xff]
    %v15 = vld [vmem:[%s0 + $0x8] sm:$0xff]
    %v18 = vrot.slane %v14, 7
    %v19 = vrot.slane %v15, 7
    %vm22 = vcmask 1040384
    %v23 = vsel %vm22, %v18, %v18
    %v24 = vsel %vm22, %v19, %v19
    %v25 = vrot.slane %v14, 1
    %v26 = vrot.slane %v15, 1
    %vm29 = vcmask 1046528
    %v30 = vsel %vm29, %v25, %v25
    %v31 = vsel %vm29, %v26, %v26
    %32 = vrot.lane.b32.xlu0 %v14, 4
    %v33 = vpop.permute.xlu0 %32
    %34 = vrot.lane.b32.xlu0 %v15, 4
    %v35 = vpop.permute.xlu0 %34
    %40 = vrot.lane.b32.xlu0 %v30, 8
    %v41 = vpop.permute.xlu0 %40
    %42 = vrot.lane.b32.xlu0 %v31, 8
    %v43 = vpop.permute.xlu0 %42
    %vm46 = vcmask 31744
    %v47 = vsel %vm46, %v23, %v33
    %v48 = vsel %vm46, %v24, %v35
    %vm49 = vcmask 64512
    %v50 = vsel %vm49, %v47, %v41
    %v51 = vsel %vm49, %v48, %v43
    %vm52 = vcmask 97280
    %v54 = vsel %vm52, %v50, 0
    %v57 = vsel %vm52, %v51, 0
    %vm59 = vcmask 1043456
    %v61 = vsel %vm59, %v13, 0
    %63 = vmatpush.msra.mxu0 0.0
    %64 = vmatpush.msra.mxu0 0.0
    %65 = vmatpush.msra.mxu0 0.0
    %66 = vmatpush.msra.mxu0 0.0
    %67 = vmatpush.msra.mxu0 0.0
    %68 = vmatpush.msra.mxu0 0.0
    %69 = vmatpush.msra.mxu0 0.0
    %70 = vmatpush.msra.mxu0 0.0
    %71 = vmatpush.msra.mxu0 0.0
    %72 = vmatpush.msra.mxu0 0.0
    %73 = vmatpush.msra.mxu0 0.0
    %74 = vmatpush.msra.mxu0 0.0
    %75 = vmatpush.msra.mxu0 0.0
    %76 = vmatpush.msra.mxu0 0.0
    %77 = vmatpush.msra.mxu0 %v61
    %78 = vmatpush.msra.mxu0 %v12
    %79 = vmatmul.f32.gmra.mxu0 %v54
    %v80 = vpop.f32.mrf.mxu0
    %v81 = vadd.f32 0.0, %v80
    %82 = vmatmul.f32.gmra.mxu0 %v57
    %v83 = vpop.f32.mrf.mxu0
    %v84 = vadd.f32 0.0, %v83
    %85 = vdwg.mxu0
    %v86 = vpack.c.bf16 %v81, %v81
    %v87 = vpack.c.bf16 %v84, %v84
    %vm88 = vcmask 257024
    %89 = vst.msk [vmem:[#allocation2] sm:$0xf] %vm88, %v86
    %90 = vst.msk [vmem:[#allocation2 + $0x4] sm:$0xf] %vm88, %v87
    // Predicated region
    $region10: #{data_embedding_wo_pos_temp.1} parent=1 // pred_check
      _
    $region11: #{data_embedding_wo_pos_temp.1} parent=1 // pred_check_branch
      %92 = sbr.rel (0) target = $region13
    $region12: #{data_embedding_wo_pos_temp.1} parent=1 // pred_region
      %94 = vsyncadd [#allocation3], 0
      %s95 = sshll.u32 [#allocation2], 4
      %s96 = int_to_ptr.vmem [resolvable:$true] %s95
      %s97 = sshll.u32 %s2, 4
      %s98 = int_to_ptr.hbm [resolvable:$true] %s97
      %103 = dma.vmem_to_hbm [thread:$0]  %s96, 128, %s98, [#allocation3], 64, 64, 4
    $region13: #{data_embedding_wo_pos_temp.1} parent=1 // pred_fallthru
      _
    // Predicated region
    $region14: #{data_embedding_wo_pos_temp.1} parent=1 // pred_check
      _
    $region15: #{data_embedding_wo_pos_temp.1} parent=1 // pred_check_branch
      %105 = sbr.rel (0) target = $region17
    $region16: #{data_embedding_wo_pos_temp.1} parent=1 // pred_region
      %107 = dma.done [#allocation3], 128
    $region17: #{data_embedding_wo_pos_temp.1} parent=1 // pred_fallthru
      _
    %108 = vsyncpa [#allocation3], 1

</llo_original>
